<compile_context>
chip_gen: v7x
topology: tpu7x:2x2x1
jax: 0.10.0
libtpu: 0.0.40
codegen_flags: <defaults>
</compile_context>

<pallas_src>
import functools

import jax
import jax.numpy as jnp
import numpy as np
from jax import lax
from jax.experimental import pallas as pl
from jax.experimental.pallas import tpu as pltpu

_MIB = 1024 * 1024


# ---------------------------------------------------------------------------
# shared in-kernel helpers
# ---------------------------------------------------------------------------

def _pairwise_sq_dists(a, b):
    """||a_i - b_j||^2 for row tiles a:(m,D), b:(n,D).

    The gram block is fed to the MXU in the operands' native dtype (bf16 stays
    bf16, f32 stays f32) with an f32 accumulator; row norms are f32.
    """
    a32 = a.astype(jnp.float32)
    b32 = b.astype(jnp.float32)
    sq_a = jnp.sum(a32 * a32, axis=-1, keepdims=True)                    # (m, 1)
    sq_b = jnp.sum(b32 * b32, axis=-1, keepdims=True)                    # (n, 1)
    gram = lax.dot_general(a, b, (((1,), (1,)), ((), ())),
                           preferred_element_type=jnp.float32)           # (m, n)
    # clamp tiny negative rounding noise (intentional, benign deviation)
    return jnp.maximum(sq_a + sq_b.T - 2.0 * gram, 0.0)


def _multi_bandwidth_kernel_sum(l2, inv_bw, kernel_mul, kernel_num):
    """sum_{i<kernel_num} exp(-l2 / (bw * kernel_mul**i)).

    For any integer kernel_mul >= 2 only ONE exp (at the largest bandwidth)
    hits the single EUP slot; the remaining terms are generated by repeated
    integer powers on the 4-wide VALU.
    """
    if kernel_num <= 0:
        return jnp.zeros_like(l2)
    mul_int = int(round(kernel_mul))
    integer_mul = abs(kernel_mul - mul_int) < 1e-12 and mul_int >= 2
    if kernel_num == 1 or not integer_mul:
        acc = None
        for i in range(kernel_num):
            term = jnp.exp(-l2 * (inv_bw * (kernel_mul ** (-i))))
            acc = term if acc is None else acc + term
        return acc
    # largest bandwidth = bw * mul^(kernel_num-1)  ->  smallest scale
    scale = inv_bw * (float(mul_int) ** (-(kernel_num - 1)))
    term = jnp.exp(-l2 * scale)
    acc = term
    for _ in range(kernel_num - 1):
        nxt = term
        for _ in range(mul_int - 1):          # term ** mul_int, VALU only
            nxt = nxt * term
        term = nxt
        acc = acc + term
    return acc


# ---------------------------------------------------------------------------
# generation-aware sizing
# ---------------------------------------------------------------------------

def _vmem_budget_bytes():
    """Explicit VMEM budget (also used as vmem_limit_bytes)."""
    try:
        cap = int(pltpu.get_tpu_info().vmem_capacity_bytes)
    except Exception:                          # CPU tracing / old runtime
        cap = 64 * _MIB                        # conservative (v7x-sized)
    # leave headroom for Mosaic internal scratch / pipeline bookkeeping
    return min(int(cap * 0.7), 96 * _MIB)


def _round_up(x, m):
    return ((x + m - 1) // m) * m


def _small_path_bytes(B, D, itemsize):
    # inputs + ~8 live f32 (B,B) intermediates (3 l2 blocks, gram/term/acc/...)
    return 2 * B * D * itemsize + 32 * B * B + 2 * _MIB


def _pick_block_rows(B, D, itemsize, budget):
    # 128-multiples only: keeps MXU columns and vector lanes fully fed on
    # v5e (128x128 MXU) and v6e/v7x (256x256 MXU).
    cap = max(128, _round_up(B, 128))
    for cand in (512, 384, 256, 128):
        if cand > cap:
            continue
        # 2 streamed (cand, D) inputs x double buffering
        # + ~5 live f32 (cand, cand) intermediates (gram, l2, term, acc, ...)
        est = 4 * cand * D * itemsize + 20 * cand * cand + 2 * _MIB
        if est <= budget:
            return cand
    return 128


# ---------------------------------------------------------------------------
# small-batch path: single pallas_call, everything resident in VMEM
# ---------------------------------------------------------------------------

def _mmd_small_kernel(src_ref, tgt_ref, out_ref, *, batch_size, kernel_mul,
                      kernel_num):
    B = batch_size
    n = 2 * B
    src = src_ref[...]
    tgt = tgt_ref[...]

    l_ss = _pairwise_sq_dists(src, src)
    l_tt = _pairwise_sq_dists(tgt, tgt)
    l_st = _pairwise_sq_dists(src, tgt)

    # exact data-dependent bandwidth: sum over the full (2B)x(2B) L2 matrix
    # (sum(L_TS) == sum(L_ST)); one combined reduction.
    l2_total = jnp.sum(l_ss + l_tt + 2.0 * l_st)
    bandwidth = l2_total / float(n * n - n)
    bandwidth = bandwidth / (kernel_mul ** (kernel_num // 2))
    inv_bw = 1.0 / bandwidth

    k_ss = _multi_bandwidth_kernel_sum(l_ss, inv_bw, kernel_mul, kernel_num)
    k_tt = _multi_bandwidth_kernel_sum(l_tt, inv_bw, kernel_mul, kernel_num)
    k_st = _multi_bandwidth_kernel_sum(l_st, inv_bw, kernel_mul, kernel_num)

    combined = k_ss + k_tt - 2.0 * k_st           # VALU adds, one XLU reduce
    out_ref[...] = jnp.broadcast_to(jnp.sum(combined) / float(B * B), (1, 1))


def _mmd_loss_small(source, target, kernel_mul, kernel_num, vmem_limit):
    B = source.shape[0]
    kernel = functools.partial(_mmd_small_kernel, batch_size=B,
                               kernel_mul=kernel_mul, kernel_num=kernel_num)
    out = pl.pallas_call(
        kernel,
        out_shape=jax.ShapeDtypeStruct((1, 1), jnp.float32),
        in_specs=[
            pl.BlockSpec(memory_space=pltpu.MemorySpace.VMEM),
            pl.BlockSpec(memory_space=pltpu.MemorySpace.VMEM),
        ],
        out_specs=pl.BlockSpec(memory_space=pltpu.MemorySpace.VMEM),
        compiler_params=pltpu.CompilerParams(vmem_limit_bytes=vmem_limit),
    )(source, target)
    return out[0, 0]


# ---------------------------------------------------------------------------
# tiled path (large B): pass 1 = streamed inverse bandwidth,
# pass 2 = upper-triangular tile-pair sweep over the symmetric signed matrix
# ---------------------------------------------------------------------------

def _bandwidth_kernel(total_ref, inv_bw_ref, sumsq_acc, colsum_acc, *,
                      n_total, kernel_mul, kernel_num):
    r = pl.program_id(0)

    @pl.when(r == 0)
    def _():
        sumsq_acc[...] = jnp.zeros_like(sumsq_acc)
        colsum_acc[...] = jnp.zeros_like(colsum_acc)

    x = total_ref[...].astype(jnp.float32)
    sumsq_acc[...] += jnp.sum(x * x)
    colsum_acc[...] += jnp.sum(x, axis=0, keepdims=True)

    @pl.when(r == pl.num_programs(0) - 1)
    def _():
        n = float(n_total)
        # exact because the wrapper centers the data first (shift-invariant);
        # zero pad rows contribute nothing to either accumulator.
        l2_total = (2.0 * n * jnp.sum(sumsq_acc[...])
                    - 2.0 * jnp.sum(colsum_acc[...] * colsum_acc[...]))
        bw = l2_total / float(n_total * n_total - n_total)
        bw = bw / (kernel_mul ** (kernel_num // 2))
        inv_bw_ref[...] = jnp.broadcast_to(1.0 / bw, (1, 1))   # hoisted divide


def _mmd_pair_kernel(idx_i_ref, idx_j_ref, inv_bw_ref, a_ref, b_ref, part_ref,
                     *, n_half_tiles, block_rows, valid_rows, kernel_mul,
                     kernel_num, needs_mask):
    p = pl.program_id(0)
    ti = idx_i_ref[p]                    # tile index of row block (0 .. T-1)
    tj = idx_j_ref[p]                    # tile index of col block (>= ti)
    inv_bw = inv_bw_ref[0, 0]

    l2 = _pairwise_sq_dists(a_ref[...], b_ref[...])
    k = _multi_bandwidth_kernel_sum(l2, inv_bw, kernel_mul, kernel_num)

    if needs_mask:                       # zero out padded tail rows/cols
        row0 = (ti % n_half_tiles) * block_rows
        col0 = (tj % n_half_tiles) * block_rows
        rows = lax.broadcasted_iota(jnp.int32, (block_rows, block_rows), 0) + row0
        cols = lax.broadcasted_iota(jnp.int32, (block_rows, block_rows), 1) + col0
        k = jnp.where((rows < valid_rows) & (cols < valid_rows), k, 0.0)

    # sign: +1 inside the SS / TT quadrants, -1 for the cross quadrant;
    # weight: 2 for off-diagonal tile pairs (symmetry of the signed matrix).
    same_half = (ti < n_half_tiles) == (tj < n_half_tiles)
    sign = jnp.where(same_half, 1.0, -1.0)
    weight = jnp.where(ti == tj, 1.0, 2.0)
    part_ref[...] = jnp.broadcast_to(sign * weight * jnp.sum(k), (8, 128))


def _build_total(source, target, padded_B):
    """Center (MMD is shift-invariant) and zero-pad each half to padded_B rows."""
    B, D = source.shape
    dtype = source.dtype
    s32 = source.astype(jnp.float32)
    t32 = target.astype(jnp.float32)
    mu = (jnp.sum(s32, axis=0) + jnp.sum(t32, axis=0)) / float(2 * B)
    s_c = (s32 - mu).astype(dtype)
    t_c = (t32 - mu).astype(dtype)
    pad = padded_B - B
    if pad:
        zeros = jnp.zeros((pad, D), dtype)
        s_c = jnp.concatenate([s_c, zeros], axis=0)
        t_c = jnp.concatenate([t_c, zeros], axis=0)
    return jnp.concatenate([s_c, t_c], axis=0)


def _mmd_loss_tiled(source, target, kernel_mul, kernel_num, block_rows,
                    vmem_limit):
    B, D = source.shape
    padded_B = _round_up(B, block_rows)
    n_half = padded_B // block_rows          # tiles per half
    T = 2 * n_half                           # total row tiles of [S; T]
    total = _build_total(source, target, padded_B)     # (T*block_rows, D)

    # ---- pass 1: streamed inverse bandwidth, O(nD) ----
    inv_bw = pl.pallas_call(
        functools.partial(_bandwidth_kernel, n_total=2 * B,
                          kernel_mul=kernel_mul, kernel_num=kernel_num),
        out_shape=jax.ShapeDtypeStruct((1, 1), jnp.float32),
        grid=(T,),
        in_specs=[pl.BlockSpec((block_rows, D), lambda r: (r, 0))],
        out_specs=pl.BlockSpec((1, 1), lambda r: (0, 0)),
        scratch_shapes=[
            pltpu.VMEM((1, 1), jnp.float32),
            pltpu.VMEM((1, D), jnp.float32),
        ],
        compiler_params=pltpu.CompilerParams(
            dimension_semantics=("arbitrary",), vmem_limit_bytes=vmem_limit),
    )(total)

    # ---- pass 2: upper-triangular tile-pair schedule (scalar prefetched) ----
    pairs_i, pairs_j = [], []
    for i in range(T):
        for j in range(i, T):
            pairs_i.append(i)
            pairs_j.append(j)
    num_pairs = len(pairs_i)
    idx_i = jnp.asarray(np.asarray(pairs_i, dtype=np.int32))
    idx_j = jnp.asarray(np.asarray(pairs_j, dtype=np.int32))

    kernel = functools.partial(
        _mmd_pair_kernel, n_half_tiles=n_half, block_rows=block_rows,
        valid_rows=B, kernel_mul=kernel_mul, kernel_num=kernel_num,
        needs_mask=(padded_B != B))

    partials = pl.pallas_call(
        kernel,
        out_shape=jax.ShapeDtypeStruct((num_pairs * 8, 128), jnp.float32),
        grid_spec=pltpu.PrefetchScalarGridSpec(
            num_scalar_prefetch=2,
            grid=(num_pairs,),
            in_specs=[
                pl.BlockSpec(memory_space=pltpu.MemorySpace.SMEM),  # 1/bandwidth
                pl.BlockSpec((block_rows, D), lambda p, ii, jj: (ii[p], 0)),
                pl.BlockSpec((block_rows, D), lambda p, ii, jj: (jj[p], 0)),
            ],
            out_specs=pl.BlockSpec((8, 128), lambda p, ii, jj: (p, 0)),
        ),
        compiler_params=pltpu.CompilerParams(
            dimension_semantics=("parallel",),        # pairs shard across TCs
            vmem_limit_bytes=vmem_limit),
    )(idx_i, idx_j, inv_bw, total, total)

    # each pair's (8,128) output block carries its signed sum in every element
    return jnp.sum(partials[::8, 0]) / float(B * B)


# ---------------------------------------------------------------------------
# public wrapper
# ---------------------------------------------------------------------------

def mmd_loss(source, target, kernel_mul=2.0, kernel_num=5, *, block_rows=None):
    """Pallas TPU implementation of MMD_loss.forward. Returns a scalar."""
    assert source.shape == target.shape and source.ndim == 2
    B, D = source.shape
    kernel_mul = float(kernel_mul)
    kernel_num = int(kernel_num)
    itemsize = jnp.dtype(source.dtype).itemsize
    budget = _vmem_budget_bytes()

    if block_rows is None:
        if _small_path_bytes(B, D, itemsize) <= budget // 2:
            return _mmd_loss_small(source, target, kernel_mul, kernel_num,
                                   budget)
        block_rows = _pick_block_rows(B, D, itemsize, budget)
    assert block_rows % 8 == 0, "block_rows must be a multiple of 8 (sublanes)"
    return _mmd_loss_tiled(source, target, kernel_mul, kernel_num, block_rows,
                           budget)


# ---------------------------------------------------------------------------
# pure-JAX reference mirroring the PyTorch module exactly
# ---------------------------------------------------------------------------

def _mmd_loss_ref(source, target, kernel_mul=2.0, kernel_num=5):
    B = source.shape[0]
    n = 2 * B
    total = jnp.concatenate([source, target], axis=0).astype(jnp.float32)
    diff = total[None, :, :] - total[:, None, :]
    l2 = jnp.sum(diff * diff, axis=2)
    bandwidth = jnp.sum(l2) / (n * n - n)
    bandwidth = bandwidth / (kernel_mul ** (kernel_num // 2))
    kernels = sum(jnp.exp(-l2 / (bandwidth * kernel_mul ** i))
                  for i in range(kernel_num))
    XX = kernels[:B, :B]
    YY = kernels[B:, B:]
    XY = kernels[:B, B:]
    YX = kernels[B:, :B]
    return jnp.mean(XX + YY - XY - YX)


if __name__ == "__main__":
    key = jax.random.PRNGKey(0)
    k1, k2, k3, k4 = jax.random.split(key, 4)

    # Small path: single-invocation, everything-resident kernel.
    B, D = 8, 32
    source = jax.random.normal(k1, (B, D), dtype=jnp.float32)
    target = jax.random.normal(k2, (B, D), dtype=jnp.float32) + 0.5
    out_small = jax.block_until_ready(mmd_loss(source, target))
    ref_small = jax.block_until_ready(_mmd_loss_ref(source, target))
    np.testing.assert_allclose(np.asarray(out_small), np.asarray(ref_small),
                               rtol=1e-4, atol=1e-5)

    # Tiled symmetric path, forced with small tiles; B deliberately NOT a
    # multiple of block_rows so the masked tail tile is exercised.
    B2, D2 = 20, 32
    source2 = jax.random.normal(k3, (B2, D2), dtype=jnp.float32)
    target2 = jax.random.normal(k4, (B2, D2), dtype=jnp.float32) + 0.5
    out_tiled = jax.block_until_ready(mmd_loss(source2, target2, block_rows=8))
    ref_tiled = jax.block_until_ready(_mmd_loss_ref(source2, target2))
    np.testing.assert_allclose(np.asarray(out_tiled), np.asarray(ref_tiled),
                               rtol=1e-4, atol=1e-5)

    print("KERNEL_OK")
</pallas_src>

<mosaic_0001>
module attributes {stable_mosaic.version = 11 : i64} {
  func.func @_mmd_small_kernel(%arg0: memref<8x32xf32, #tpu.memory_space<vmem>>, %arg1: memref<8x32xf32, #tpu.memory_space<vmem>>, %arg2: memref<1x1xf32, #tpu.memory_space<vmem>>) attributes {dimension_semantics = [], scalar_prefetch = 0 : i64, scratch_operands = 0 : i64, tpu.core_type = #tpu.core_type<tc>} {
    %c0 = arith.constant 0 : index
    %c0_0 = arith.constant 0 : index
    %0 = vector.load %arg0[%c0, %c0_0] : memref<8x32xf32, #tpu.memory_space<vmem>>, vector<8x32xf32>
    %c0_1 = arith.constant 0 : index
    %c0_2 = arith.constant 0 : index
    %1 = vector.load %arg1[%c0_1, %c0_2] : memref<8x32xf32, #tpu.memory_space<vmem>>, vector<8x32xf32>
    %2 = arith.mulf %0, %0 : vector<8x32xf32>
    %cst = arith.constant dense<0.000000e+00> : vector<8xf32>
    %3 = vector.multi_reduction <add>, %2, %cst [1] : vector<8x32xf32> to vector<8xf32>
    %4 = vector.shape_cast %3 : vector<8xf32> to vector<8x1xf32>
    %5 = arith.mulf %0, %0 : vector<8x32xf32>
    %cst_3 = arith.constant dense<0.000000e+00> : vector<8xf32>
    %6 = vector.multi_reduction <add>, %5, %cst_3 [1] : vector<8x32xf32> to vector<8xf32>
    %7 = vector.shape_cast %6 : vector<8xf32> to vector<8x1xf32>
    %cst_4 = arith.constant dense<0.000000e+00> : vector<8x8xf32>
    %8 = tpu.matmul %0, %0, %cst_4 {dimension_numbers = #tpu.dot_dimension_numbers<[1], [1], [0], [0], [0, 0, 1, 0], [], []>} : vector<8x32xf32>, vector<8x32xf32>, vector<8x8xf32> -> vector<8x8xf32>
    %9 = tpu.transpose %7, [1, 0] : vector<8x1xf32> -> vector<1x8xf32>
    %10 = vector.broadcast %4 : vector<8x1xf32> to vector<8x8xf32>
    %11 = vector.broadcast %9 : vector<1x8xf32> to vector<8x8xf32>
    %12 = arith.addf %10, %11 : vector<8x8xf32>
    %cst_5 = arith.constant 2.000000e+00 : f32
    %13 = vector.broadcast %cst_5 : f32 to vector<8x8xf32>
    %14 = arith.mulf %13, %8 : vector<8x8xf32>
    %15 = arith.subf %12, %14 : vector<8x8xf32>
    %cst_6 = arith.constant 0.000000e+00 : f32
    %16 = vector.broadcast %cst_6 : f32 to vector<8x8xf32>
    %17 = arith.maximumf %15, %16 : vector<8x8xf32>
    %18 = arith.mulf %1, %1 : vector<8x32xf32>
    %cst_7 = arith.constant dense<0.000000e+00> : vector<8xf32>
    %19 = vector.multi_reduction <add>, %18, %cst_7 [1] : vector<8x32xf32> to vector<8xf32>
    %20 = vector.shape_cast %19 : vector<8xf32> to vector<8x1xf32>
    %21 = arith.mulf %1, %1 : vector<8x32xf32>
    %cst_8 = arith.constant dense<0.000000e+00> : vector<8xf32>
    %22 = vector.multi_reduction <add>, %21, %cst_8 [1] : vector<8x32xf32> to vector<8xf32>
    %23 = vector.shape_cast %22 : vector<8xf32> to vector<8x1xf32>
    %cst_9 = arith.constant dense<0.000000e+00> : vector<8x8xf32>
    %24 = tpu.matmul %1, %1, %cst_9 {dimension_numbers = #tpu.dot_dimension_numbers<[1], [1], [0], [0], [0, 0, 1, 0], [], []>} : vector<8x32xf32>, vector<8x32xf32>, vector<8x8xf32> -> vector<8x8xf32>
    %25 = tpu.transpose %23, [1, 0] : vector<8x1xf32> -> vector<1x8xf32>
    %26 = vector.broadcast %20 : vector<8x1xf32> to vector<8x8xf32>
    %27 = vector.broadcast %25 : vector<1x8xf32> to vector<8x8xf32>
    %28 = arith.addf %26, %27 : vector<8x8xf32>
    %cst_10 = arith.constant 2.000000e+00 : f32
    %29 = vector.broadcast %cst_10 : f32 to vector<8x8xf32>
    %30 = arith.mulf %29, %24 : vector<8x8xf32>
    %31 = arith.subf %28, %30 : vector<8x8xf32>
    %cst_11 = arith.constant 0.000000e+00 : f32
    %32 = vector.broadcast %cst_11 : f32 to vector<8x8xf32>
    %33 = arith.maximumf %31, %32 : vector<8x8xf32>
    %34 = arith.mulf %0, %0 : vector<8x32xf32>
    %cst_12 = arith.constant dense<0.000000e+00> : vector<8xf32>
    %35 = vector.multi_reduction <add>, %34, %cst_12 [1] : vector<8x32xf32> to vector<8xf32>
    %36 = vector.shape_cast %35 : vector<8xf32> to vector<8x1xf32>
    %37 = arith.mulf %1, %1 : vector<8x32xf32>
    %cst_13 = arith.constant dense<0.000000e+00> : vector<8xf32>
    %38 = vector.multi_reduction <add>, %37, %cst_13 [1] : vector<8x32xf32> to vector<8xf32>
    %39 = vector.shape_cast %38 : vector<8xf32> to vector<8x1xf32>
    %cst_14 = arith.constant dense<0.000000e+00> : vector<8x8xf32>
    %40 = tpu.matmul %0, %1, %cst_14 {dimension_numbers = #tpu.dot_dimension_numbers<[1], [1], [0], [0], [0, 0, 1, 0], [], []>} : vector<8x32xf32>, vector<8x32xf32>, vector<8x8xf32> -> vector<8x8xf32>
    %41 = tpu.transpose %39, [1, 0] : vector<8x1xf32> -> vector<1x8xf32>
    %42 = vector.broadcast %36 : vector<8x1xf32> to vector<8x8xf32>
    %43 = vector.broadcast %41 : vector<1x8xf32> to vector<8x8xf32>
    %44 = arith.addf %42, %43 : vector<8x8xf32>
    %cst_15 = arith.constant 2.000000e+00 : f32
    %45 = vector.broadcast %cst_15 : f32 to vector<8x8xf32>
    %46 = arith.mulf %45, %40 : vector<8x8xf32>
    %47 = arith.subf %44, %46 : vector<8x8xf32>
    %cst_16 = arith.constant 0.000000e+00 : f32
    %48 = vector.broadcast %cst_16 : f32 to vector<8x8xf32>
    %49 = arith.maximumf %47, %48 : vector<8x8xf32>
    %50 = arith.addf %17, %33 : vector<8x8xf32>
    %cst_17 = arith.constant 2.000000e+00 : f32
    %51 = vector.broadcast %cst_17 : f32 to vector<8x8xf32>
    %52 = arith.mulf %51, %49 : vector<8x8xf32>
    %53 = arith.addf %50, %52 : vector<8x8xf32>
    %54 = vector.shape_cast %53 : vector<8x8xf32> to vector<1x8x8xf32>
    %cst_18 = arith.constant dense<0.000000e+00> : vector<1xf32>
    %55 = vector.multi_reduction <add>, %54, %cst_18 [1, 2] : vector<1x8x8xf32> to vector<1xf32>
    %56 = vector.shape_cast %55 : vector<1xf32> to vector<1x1x1xf32>
    %57 = vector.extract %56[0, 0, 0] : f32 from vector<1x1x1xf32>
    %cst_19 = arith.constant 2.400000e+02 : f32
    %58 = arith.divf %57, %cst_19 : f32
    %cst_20 = arith.constant 4.000000e+00 : f32
    %59 = arith.divf %58, %cst_20 : f32
    %cst_21 = arith.constant 1.000000e+00 : f32
    %60 = arith.divf %cst_21, %59 : f32
    %cst_22 = arith.constant 6.250000e-02 : f32
    %61 = arith.mulf %60, %cst_22 : f32
    %cst_23 = arith.constant 0.000000e+00 : f32
    %62 = vector.broadcast %cst_23 : f32 to vector<8x8xf32>
    %63 = arith.subf %62, %17 : vector<8x8xf32>
    %64 = vector.broadcast %61 : f32 to vector<8x8xf32>
    %65 = arith.mulf %63, %64 : vector<8x8xf32>
    %66 = math.exp %65 : vector<8x8xf32>
    %67 = arith.mulf %66, %66 : vector<8x8xf32>
    %68 = arith.addf %66, %67 : vector<8x8xf32>
    %69 = arith.mulf %67, %67 : vector<8x8xf32>
    %70 = arith.addf %68, %69 : vector<8x8xf32>
    %71 = arith.mulf %69, %69 : vector<8x8xf32>
    %72 = arith.addf %70, %71 : vector<8x8xf32>
    %73 = arith.mulf %71, %71 : vector<8x8xf32>
    %74 = arith.addf %72, %73 : vector<8x8xf32>
    %cst_24 = arith.constant 6.250000e-02 : f32
    %75 = arith.mulf %60, %cst_24 : f32
    %cst_25 = arith.constant 0.000000e+00 : f32
    %76 = vector.broadcast %cst_25 : f32 to vector<8x8xf32>
    %77 = arith.subf %76, %33 : vector<8x8xf32>
    %78 = vector.broadcast %75 : f32 to vector<8x8xf32>
    %79 = arith.mulf %77, %78 : vector<8x8xf32>
    %80 = math.exp %79 : vector<8x8xf32>
    %81 = arith.mulf %80, %80 : vector<8x8xf32>
    %82 = arith.addf %80, %81 : vector<8x8xf32>
    %83 = arith.mulf %81, %81 : vector<8x8xf32>
    %84 = arith.addf %82, %83 : vector<8x8xf32>
    %85 = arith.mulf %83, %83 : vector<8x8xf32>
    %86 = arith.addf %84, %85 : vector<8x8xf32>
    %87 = arith.mulf %85, %85 : vector<8x8xf32>
    %88 = arith.addf %86, %87 : vector<8x8xf32>
    %cst_26 = arith.constant 6.250000e-02 : f32
    %89 = arith.mulf %60, %cst_26 : f32
    %cst_27 = arith.constant 0.000000e+00 : f32
    %90 = vector.broadcast %cst_27 : f32 to vector<8x8xf32>
    %91 = arith.subf %90, %49 : vector<8x8xf32>
    %92 = vector.broadcast %89 : f32 to vector<8x8xf32>
    %93 = arith.mulf %91, %92 : vector<8x8xf32>
    %94 = math.exp %93 : vector<8x8xf32>
    %95 = arith.mulf %94, %94 : vector<8x8xf32>
    %96 = arith.addf %94, %95 : vector<8x8xf32>
    %97 = arith.mulf %95, %95 : vector<8x8xf32>
    %98 = arith.addf %96, %97 : vector<8x8xf32>
    %99 = arith.mulf %97, %97 : vector<8x8xf32>
    %100 = arith.addf %98, %99 : vector<8x8xf32>
    %101 = arith.mulf %99, %99 : vector<8x8xf32>
    %102 = arith.addf %100, %101 : vector<8x8xf32>
    %103 = arith.addf %74, %88 : vector<8x8xf32>
    %cst_28 = arith.constant 2.000000e+00 : f32
    %104 = vector.broadcast %cst_28 : f32 to vector<8x8xf32>
    %105 = arith.mulf %104, %102 : vector<8x8xf32>
    %106 = arith.subf %103, %105 : vector<8x8xf32>
    %107 = vector.shape_cast %106 : vector<8x8xf32> to vector<1x8x8xf32>
    %cst_29 = arith.constant dense<0.000000e+00> : vector<1xf32>
    %108 = vector.multi_reduction <add>, %107, %cst_29 [1, 2] : vector<1x8x8xf32> to vector<1xf32>
    %109 = vector.shape_cast %108 : vector<1xf32> to vector<1x1x1xf32>
    %110 = vector.extract %109[0, 0, 0] : f32 from vector<1x1x1xf32>
    %cst_30 = arith.constant 6.400000e+01 : f32
    %111 = arith.divf %110, %cst_30 : f32
    %112 = vector.broadcast %111 : f32 to vector<1x1xf32>
    %c0_31 = arith.constant 0 : index
    %c0_32 = arith.constant 0 : index
    %113 = vector.load %arg2[%c0_31, %c0_32] : memref<1x1xf32, #tpu.memory_space<vmem>>, vector<1x1xf32>
    tpu.vector_store %arg2[%c0_31, %c0_32], %112 {strides = array<i32>} : memref<1x1xf32, #tpu.memory_space<vmem>>, vector<1x1xf32>,
    return
  }
}

</mosaic_0001>

<llo_original>
// kernel: tpu_custom_call.1
$region0: #{tpu_custom_call.1}
  #allocation0 [shape = 'u32[]', space=smem, size = 0x4, offset = 0x4, fixed_abs, tag = 'smem constant byte address 0x4 - core index']
  #allocation1 [shape = 'u32[144,128]{1,0:T(1,128)}', space=vmem, size = 0x12000, scoped, tag = 'internal scratch']
  %s0 = inlined_call_operand.hbm [shape: f32[8,32], index: 0, kind: input, shape index: {}]
  %s1 = inlined_call_operand.hbm [shape: f32[8,32], index: 1, kind: input, shape index: {}]
  %s2 = inlined_call_operand.hbm [shape: f32[1,1], index: 2, kind: output, shape index: {}]
  %s3 = sld [smem:[#allocation0]]
  $region26: #{tpu_custom_call.1} parent=0
    _
  %s5 = ssub.s32 1, %s3
  %s6 = scalar_select 0, %s5, %s3
  $region1: #{tpu_custom_call.1} parent=0
    #allocation2 [shape = 'u8[4096]{0}', space=vmem, size = 0x1000, scoped, tag = 'input window, operand 0, single buffered']
    #allocation3 [shape = 's32[1]{0}', space=sflag, size = 0x4, scoped, tag = 'scoped memory for tpu_custom_call.1']
    #allocation4 [shape = 's32[1]{0}', space=sflag, size = 0x4, scoped, tag = 'scoped memory for tpu_custom_call.1']
    #allocation5 [shape = 'u8[4096]{0}', space=vmem, size = 0x1000, scoped, tag = 'input window, operand 1, single buffered']
    #allocation6 [shape = 's32[1]{0}', space=sflag, size = 0x4, scoped, tag = 'scoped memory for tpu_custom_call.1']
    #allocation7 [shape = 'u8[512]{0}', space=vmem, size = 0x400, scoped, tag = 'output window, operand 0, single buffered']
    %7 = vsyncpa [#allocation3], 0
    %8 = vsyncpa [#allocation6], 0
    %9 = vsyncpa [#allocation4], 0
    // Predicated region
    $region2: #{tpu_custom_call.1} parent=1 // pred_check
      _
    $region3: #{tpu_custom_call.1} parent=1 // pred_check_branch
      %11 = sbr.rel (0) target = $region5
    $region4: #{tpu_custom_call.1} parent=1 // pred_region
      %s13 = ssub.s32 128, 128
      %14 = vsyncadd [#allocation3], %s13
      %s16 = sshll.u32 [#allocation2], 4
      %s17 = int_to_ptr.vmem [resolvable:$true] %s16
      %19 = dma.hbm_to_vmem [thread:$0]  %s0, 128, %s17, [#allocation3]
    $region5: #{tpu_custom_call.1} parent=1 // pred_fallthru
      _
    // Predicated region
    $region6: #{tpu_custom_call.1} parent=1 // pred_check
      _
    $region7: #{tpu_custom_call.1} parent=1 // pred_check_branch
      %21 = sbr.rel (0) target = $region9
    $region8: #{tpu_custom_call.1} parent=1 // pred_region
      %s23 = ssub.s32 128, 128
      %24 = vsyncadd [#allocation6], %s23
      %s26 = sshll.u32 [#allocation5], 4
      %s27 = int_to_ptr.vmem [resolvable:$true] %s26
      %29 = dma.hbm_to_vmem [thread:$0]  %s1, 128, %s27, [#allocation6]
    $region9: #{tpu_custom_call.1} parent=1 // pred_fallthru
      _
    // Predicated region
    $region10: #{tpu_custom_call.1} parent=1 // pred_check
      _
    $region11: #{tpu_custom_call.1} parent=1 // pred_check_branch
      %31 = sbr.rel (0) target = $region13
    $region12: #{tpu_custom_call.1} parent=1 // pred_region
      %32 = dma.done [#allocation3], 128
    $region13: #{tpu_custom_call.1} parent=1 // pred_fallthru
      _
    // Predicated region
    $region14: #{tpu_custom_call.1} parent=1 // pred_check
      _
    $region15: #{tpu_custom_call.1} parent=1 // pred_check_branch
      %34 = sbr.rel (0) target = $region17
    $region16: #{tpu_custom_call.1} parent=1 // pred_region
      %35 = dma.done [#allocation6], 128
    $region17: #{tpu_custom_call.1} parent=1 // pred_fallthru
      _
    %v36 = vld [vmem:[#allocation2] sm:$0xff]
    %v37 = vld [vmem:[#allocation5] sm:$0xff]
    %v38 = vmul.f32 %v36, %v36
    %vm39 = vcmask 261120
    %v40 = vsel %vm39, %v38, 0.0
    %41 = vadd.xlane.f32.xlu0 %v40
    %v42 = vpop.xlane.xlu0 %41
    %v44 = vsel %vm39, %v36, 0
    %46 = vmatprep.subr.mxu0 0.0
    %47 = vmatpush1.xpose.msra.mxu0 %v44
    %48 = vmatprep.subr.mxu0 0.0
    %49 = vmatpush1.xpose.msra.mxu0 0.0
    %50 = vmatprep.subr.mxu0 0.0
    %51 = vmatpush1.xpose.msra.mxu0 0.0
    %52 = vmatprep.subr.mxu0 0.0
    %53 = vmatpush1.xpose.msra.mxu0 0.0
    %54 = vmatprep.subr.mxu0 0.0
    %55 = vmatpush1.xpose.msra.mxu0 0.0
    %56 = vmatprep.subr.mxu0 0.0
    %57 = vmatpush1.xpose.msra.mxu0 0.0
    %58 = vmatprep.subr.mxu0 0.0
    %59 = vmatpush1.xpose.msra.mxu0 0.0
    %60 = vmatprep.subr.mxu0 0.0
    %61 = vmatpush1.xpose.msra.mxu0 0.0
    %62 = vmatprep.subr.mxu0 0.0
    %63 = vmatpush1.xpose.msra.mxu0 0.0
    %64 = vmatprep.subr.mxu0 0.0
    %65 = vmatpush1.xpose.msra.mxu0 0.0
    %66 = vmatprep.subr.mxu0 0.0
    %67 = vmatpush1.xpose.msra.mxu0 0.0
    %68 = vmatprep.subr.mxu0 0.0
    %69 = vmatpush1.xpose.msra.mxu0 0.0
    %70 = vmatprep.subr.mxu0 0.0
    %71 = vmatpush1.xpose.msra.mxu0 0.0
    %72 = vmatprep.subr.mxu0 0.0
    %73 = vmatpush1.xpose.msra.mxu0 0.0
    %74 = vmatprep.subr.mxu0 0.0
    %75 = vmatpush1.xpose.msra.mxu0 0.0
    %76 = vmatprep.subr.mxu0 0.0
    %77 = vmatpush1.xpose.msra.mxu0 0.0
    %78 = vmatprep.subr.mxu0 0.0
    %79 = vmatpush1.xpose.msra.mxu0 0.0
    %80 = vmatprep.subr.mxu0 0.0
    %81 = vmatpush1.xpose.msra.mxu0 0.0
    %82 = vmatprep.subr.mxu0 0.0
    %83 = vmatpush1.xpose.msra.mxu0 0.0
    %84 = vmatprep.subr.mxu0 0.0
    %85 = vmatpush1.xpose.msra.mxu0 0.0
    %86 = vmatprep.subr.mxu0 0.0
    %87 = vmatpush1.xpose.msra.mxu0 0.0
    %88 = vmatprep.subr.mxu0 0.0
    %89 = vmatpush1.xpose.msra.mxu0 0.0
    %90 = vmatprep.subr.mxu0 0.0
    %91 = vmatpush1.xpose.msra.mxu0 0.0
    %92 = vmatprep.subr.mxu0 0.0
    %93 = vmatpush1.xpose.msra.mxu0 0.0
    %94 = vmatprep.subr.mxu0 0.0
    %95 = vmatpush1.xpose.msra.mxu0 0.0
    %96 = vmatprep.subr.mxu0 0.0
    %97 = vmatpush1.xpose.msra.mxu0 0.0
    %98 = vmatprep.subr.mxu0 0.0
    %99 = vmatpush1.xpose.msra.mxu0 0.0
    %100 = vmatprep.subr.mxu0 0.0
    %101 = vmatpush1.xpose.msra.mxu0 0.0
    %102 = vmatprep.subr.mxu0 0.0
    %103 = vmatpush1.xpose.msra.mxu0 0.0
    %104 = vmatprep.subr.mxu0 0.0
    %105 = vmatpush1.xpose.msra.mxu0 0.0
    %106 = vmatprep.subr.mxu0 0.0
    %107 = vmatpush1.xpose.msra.mxu0 0.0
    %108 = vmatprep.subr.mxu0 0.0
    %109 = vmatpush1.xpose.msra.mxu0 0.0
    %110 = vmatprep.mubr.f32.mxu0 0.0
    %111 = vmatmul.mubr.f32.gmra.mrb[0].mxu0 %v44
    %v112 = vpop.f32.mrb[0].mxu0
    %v113 = vadd.f32 0.0, %v112
    %v114 = vpop.f32.mrb[0].mxu0
    %115 = vdwg.mxu0
    %116 = vxpose.xlu0.b32.start [1/16] %v42, 128
    %117 = vxpose.xlu0.b32.cont [2/16] 0.0, 128
    %118 = vxpose.xlu0.b32.cont [3/16] 0.0, 128
    %119 = vxpose.xlu0.b32.cont [4/16] 0.0, 128
    %120 = vxpose.xlu0.b32.cont [5/16] 0.0, 128
    %121 = vxpose.xlu0.b32.cont [6/16] 0.0, 128
    %122 = vxpose.xlu0.b32.cont [7/16] 0.0, 128
    %123 = vxpose.xlu0.b32.cont [8/16] 0.0, 128
    %124 = vxpose.xlu0.b32.cont [9/16] 0.0, 128
    %125 = vxpose.xlu0.b32.cont [10/16] 0.0, 128
    %126 = vxpose.xlu0.b32.cont [11/16] 0.0, 128
    %127 = vxpose.xlu0.b32.cont [12/16] 0.0, 128
    %128 = vxpose.xlu0.b32.cont [13/16] 0.0, 128
    %129 = vxpose.xlu0.b32.cont [14/16] 0.0, 128
    %130 = vxpose.xlu0.b32.cont [15/16] 0.0, 128
    %131 = vxpose.xlu0.b32.end [16/16] 0.0, 128
    %v132 = vpop.trf.xlu0
    %v133 = vpop.trf.xlu0
    %v134 = vpop.trf.xlu0
    %v135 = vpop.trf.xlu0
    %v136 = vpop.trf.xlu0
    %v137 = vpop.trf.xlu0
    %v138 = vpop.trf.xlu0
    %v139 = vpop.trf.xlu0
    %v140 = vpop.trf.xlu0
    %v141 = vpop.trf.xlu0
    %v142 = vpop.trf.xlu0
    %v143 = vpop.trf.xlu0
    %v144 = vpop.trf.xlu0
    %v145 = vpop.trf.xlu0
    %v146 = vpop.trf.xlu0
    %v147 = vpop.trf.xlu0
    %v148 = vlaneseq
    %v149 = vshrl.u32 %v148, 7
    %v150 = vsub.s32 0, %v149
    %v151 = vrot.slane %v132, %v150
    %v152 = vadd.f32 %v42, %v151
    %v153 = vmul.f32 %v113, 2.0
    %v154 = vsub.f32 %v152, %v153
    %v155 = vmax.f32 %v154, 0.0
    %v156 = vmul.f32 %v37, %v37
    %v157 = vsel %vm39, %v156, 0.0
    %158 = vadd.xlane.f32.xlu0 %v157
    %v159 = vpop.xlane.xlu0 %158
    %v161 = vsel %vm39, %v37, 0
    %163 = vmatprep.subr.mxu0 0.0
    %164 = vmatpush1.xpose.msra.mxu0 %v161
    %165 = vmatprep.subr.mxu0 0.0
    %166 = vmatpush1.xpose.msra.mxu0 0.0
    %167 = vmatprep.subr.mxu0 0.0
    %168 = vmatpush1.xpose.msra.mxu0 0.0
    %169 = vmatprep.subr.mxu0 0.0
    %170 = vmatpush1.xpose.msra.mxu0 0.0
    %171 = vmatprep.subr.mxu0 0.0
    %172 = vmatpush1.xpose.msra.mxu0 0.0
    %173 = vmatprep.subr.mxu0 0.0
    %174 = vmatpush1.xpose.msra.mxu0 0.0
    %175 = vmatprep.subr.mxu0 0.0
    %176 = vmatpush1.xpose.msra.mxu0 0.0
    %177 = vmatprep.subr.mxu0 0.0
    %178 = vmatpush1.xpose.msra.mxu0 0.0
    %179 = vmatprep.subr.mxu0 0.0
    %180 = vmatpush1.xpose.msra.mxu0 0.0
    %181 = vmatprep.subr.mxu0 0.0
    %182 = vmatpush1.xpose.msra.mxu0 0.0
    %183 = vmatprep.subr.mxu0 0.0
    %184 = vmatpush1.xpose.msra.mxu0 0.0
    %185 = vmatprep.subr.mxu0 0.0
    %186 = vmatpush1.xpose.msra.mxu0 0.0
    %187 = vmatprep.subr.mxu0 0.0
    %188 = vmatpush1.xpose.msra.mxu0 0.0
    %189 = vmatprep.subr.mxu0 0.0
    %190 = vmatpush1.xpose.msra.mxu0 0.0
    %191 = vmatprep.subr.mxu0 0.0
    %192 = vmatpush1.xpose.msra.mxu0 0.0
    %193 = vmatprep.subr.mxu0 0.0
    %194 = vmatpush1.xpose.msra.mxu0 0.0
    %195 = vmatprep.subr.mxu0 0.0
    %196 = vmatpush1.xpose.msra.mxu0 0.0
    %197 = vmatprep.subr.mxu0 0.0
    %198 = vmatpush1.xpose.msra.mxu0 0.0
    %199 = vmatprep.subr.mxu0 0.0
    %200 = vmatpush1.xpose.msra.mxu0 0.0
    %201 = vmatprep.subr.mxu0 0.0
    %202 = vmatpush1.xpose.msra.mxu0 0.0
    %203 = vmatprep.subr.mxu0 0.0
    %204 = vmatpush1.xpose.msra.mxu0 0.0
    %205 = vmatprep.subr.mxu0 0.0
    %206 = vmatpush1.xpose.msra.mxu0 0.0
    %207 = vmatprep.subr.mxu0 0.0
    %208 = vmatpush1.xpose.msra.mxu0 0.0
    %209 = vmatprep.subr.mxu0 0.0
    %210 = vmatpush1.xpose.msra.mxu0 0.0
    %211 = vmatprep.subr.mxu0 0.0
    %212 = vmatpush1.xpose.msra.mxu0 0.0
    %213 = vmatprep.subr.mxu0 0.0
    %214 = vmatpush1.xpose.msra.mxu0 0.0
    %215 = vmatprep.subr.mxu0 0.0
    %216 = vmatpush1.xpose.msra.mxu0 0.0
    %217 = vmatprep.subr.mxu0 0.0
    %218 = vmatpush1.xpose.msra.mxu0 0.0
    %219 = vmatprep.subr.mxu0 0.0
    %220 = vmatpush1.xpose.msra.mxu0 0.0
    %221 = vmatprep.subr.mxu0 0.0
    %222 = vmatpush1.xpose.msra.mxu0 0.0
    %223 = vmatprep.subr.mxu0 0.0
    %224 = vmatpush1.xpose.msra.mxu0 0.0
    %225 = vmatprep.subr.mxu0 0.0
    %226 = vmatpush1.xpose.msra.mxu0 0.0
    %227 = vmatprep.mubr.f32.mxu0 0.0
    %228 = vmatmul.mubr.f32.gmra.mrb[0].mxu0 %v161
    %v229 = vpop.f32.mrb[0].mxu0
    %v230 = vadd.f32 0.0, %v229
    %v231 = vpop.f32.mrb[0].mxu0
    %232 = vdwg.mxu0
    %233 = vxpose.xlu0.b32.start [1/16] %v159, 128
    %234 = vxpose.xlu0.b32.cont [2/16] 0.0, 128
    %235 = vxpose.xlu0.b32.cont [3/16] 0.0, 128
    %236 = vxpose.xlu0.b32.cont [4/16] 0.0, 128
    %237 = vxpose.xlu0.b32.cont [5/16] 0.0, 128
    %238 = vxpose.xlu0.b32.cont [6/16] 0.0, 128
    %239 = vxpose.xlu0.b32.cont [7/16] 0.0, 128
    %240 = vxpose.xlu0.b32.cont [8/16] 0.0, 128
    %241 = vxpose.xlu0.b32.cont [9/16] 0.0, 128
    %242 = vxpose.xlu0.b32.cont [10/16] 0.0, 128
    %243 = vxpose.xlu0.b32.cont [11/16] 0.0, 128
    %244 = vxpose.xlu0.b32.cont [12/16] 0.0, 128
    %245 = vxpose.xlu0.b32.cont [13/16] 0.0, 128
    %246 = vxpose.xlu0.b32.cont [14/16] 0.0, 128
    %247 = vxpose.xlu0.b32.cont [15/16] 0.0, 128
    %248 = vxpose.xlu0.b32.end [16/16] 0.0, 128
    %v249 = vpop.trf.xlu0
    %v250 = vpop.trf.xlu0
    %v251 = vpop.trf.xlu0
    %v252 = vpop.trf.xlu0
    %v253 = vpop.trf.xlu0
    %v254 = vpop.trf.xlu0
    %v255 = vpop.trf.xlu0
    %v256 = vpop.trf.xlu0
    %v257 = vpop.trf.xlu0
    %v258 = vpop.trf.xlu0
    %v259 = vpop.trf.xlu0
    %v260 = vpop.trf.xlu0
    %v261 = vpop.trf.xlu0
    %v262 = vpop.trf.xlu0
    %v263 = vpop.trf.xlu0
    %v264 = vpop.trf.xlu0
    %v265 = vlaneseq
    %v266 = vshrl.u32 %v265, 7
    %v267 = vsub.s32 0, %v266
    %v268 = vrot.slane %v249, %v267
    %v269 = vadd.f32 %v159, %v268
    %v270 = vmul.f32 %v230, 2.0
    %v271 = vsub.f32 %v269, %v270
    %v272 = vmax.f32 %v271, 0.0
    %273 = vmatprep.subr.mxu0 0.0
    %274 = vmatpush1.xpose.msra.mxu0 %v161
    %275 = vmatprep.subr.mxu0 0.0
    %276 = vmatpush1.xpose.msra.mxu0 0.0
    %277 = vmatprep.subr.mxu0 0.0
    %278 = vmatpush1.xpose.msra.mxu0 0.0
    %279 = vmatprep.subr.mxu0 0.0
    %280 = vmatpush1.xpose.msra.mxu0 0.0
    %281 = vmatprep.subr.mxu0 0.0
    %282 = vmatpush1.xpose.msra.mxu0 0.0
    %283 = vmatprep.subr.mxu0 0.0
    %284 = vmatpush1.xpose.msra.mxu0 0.0
    %285 = vmatprep.subr.mxu0 0.0
    %286 = vmatpush1.xpose.msra.mxu0 0.0
    %287 = vmatprep.subr.mxu0 0.0
    %288 = vmatpush1.xpose.msra.mxu0 0.0
    %289 = vmatprep.subr.mxu0 0.0
    %290 = vmatpush1.xpose.msra.mxu0 0.0
    %291 = vmatprep.subr.mxu0 0.0
    %292 = vmatpush1.xpose.msra.mxu0 0.0
    %293 = vmatprep.subr.mxu0 0.0
    %294 = vmatpush1.xpose.msra.mxu0 0.0
    %295 = vmatprep.subr.mxu0 0.0
    %296 = vmatpush1.xpose.msra.mxu0 0.0
    %297 = vmatprep.subr.mxu0 0.0
    %298 = vmatpush1.xpose.msra.mxu0 0.0
    %299 = vmatprep.subr.mxu0 0.0
    %300 = vmatpush1.xpose.msra.mxu0 0.0
    %301 = vmatprep.subr.mxu0 0.0
    %302 = vmatpush1.xpose.msra.mxu0 0.0
    %303 = vmatprep.subr.mxu0 0.0
    %304 = vmatpush1.xpose.msra.mxu0 0.0
    %305 = vmatprep.subr.mxu0 0.0
    %306 = vmatpush1.xpose.msra.mxu0 0.0
    %307 = vmatprep.subr.mxu0 0.0
    %308 = vmatpush1.xpose.msra.mxu0 0.0
    %309 = vmatprep.subr.mxu0 0.0
    %310 = vmatpush1.xpose.msra.mxu0 0.0
    %311 = vmatprep.subr.mxu0 0.0
    %312 = vmatpush1.xpose.msra.mxu0 0.0
    %313 = vmatprep.subr.mxu0 0.0
    %314 = vmatpush1.xpose.msra.mxu0 0.0
    %315 = vmatprep.subr.mxu0 0.0
    %316 = vmatpush1.xpose.msra.mxu0 0.0
    %317 = vmatprep.subr.mxu0 0.0
    %318 = vmatpush1.xpose.msra.mxu0 0.0
    %319 = vmatprep.subr.mxu0 0.0
    %320 = vmatpush1.xpose.msra.mxu0 0.0
    %321 = vmatprep.subr.mxu0 0.0
    %322 = vmatpush1.xpose.msra.mxu0 0.0
    %323 = vmatprep.subr.mxu0 0.0
    %324 = vmatpush1.xpose.msra.mxu0 0.0
    %325 = vmatprep.subr.mxu0 0.0
    %326 = vmatpush1.xpose.msra.mxu0 0.0
    %327 = vmatprep.subr.mxu0 0.0
    %328 = vmatpush1.xpose.msra.mxu0 0.0
    %329 = vmatprep.subr.mxu0 0.0
    %330 = vmatpush1.xpose.msra.mxu0 0.0
    %331 = vmatprep.subr.mxu0 0.0
    %332 = vmatpush1.xpose.msra.mxu0 0.0
    %333 = vmatprep.subr.mxu0 0.0
    %334 = vmatpush1.xpose.msra.mxu0 0.0
    %335 = vmatprep.subr.mxu0 0.0
    %336 = vmatpush1.xpose.msra.mxu0 0.0
    %337 = vmatprep.mubr.f32.mxu0 0.0
    %338 = vmatmul.mubr.f32.gmra.mrb[0].mxu0 %v44
    %v339 = vpop.f32.mrb[0].mxu0
    %v340 = vadd.f32 0.0, %v339
    %v341 = vpop.f32.mrb[0].mxu0
    %342 = vdwg.mxu0
    %v343 = vadd.f32 %v42, %v268
    %v344 = vmul.f32 %v340, 2.0
    %v345 = vsub.f32 %v343, %v344
    %v346 = vmax.f32 %v345, 0.0
    %v347 = vadd.f32 %v155, %v272
    %v348 = vmul.f32 %v346, 2.0
    %v349 = vadd.f32 %v347, %v348
    %vm350 = vcmask 64512
    %v351 = vsel %vm350, %v349, 0.0
    %352 = vadd.xlane.f32.xlu0 %v351
    %v353 = vpop.xlane.xlu0 %352
    %v354 = vrot.slane %v353, 4
    %v355 = vadd.f32 %v353, %v354
    %v356 = vrot.slane %v355, 2
    %v357 = vadd.f32 %v355, %v356
    %v358 = vrot.slane %v357, 1
    %v359 = vadd.f32 %v357, %v358
    %s360 = vtos %v359
    %v361 = vrcp.pop 240.0
    %s362 = vtos %v361
    %s363 = smul.f32 %s360, %s362
    %v364 = vrcp.pop 4.0
    %s365 = vtos %v364
    %s366 = smul.f32 %s363, %s365
    %v367 = vstv %s366
    %v368 = vrcp.pop %v367
    %s369 = vtos %v368
    %s370 = smul.f32 %s369, 0.0625
    %v371 = vsub.f32 0.0, %v155
    %v372 = vstv %s370
    %v373 = vmul.f32 %v371, %v372
    %v374 = vmul.f32 %v373, 1.442695
    %v375 = vpow.pop %v374
    %v376 = vmul.f32 %v375, %v375
    %v377 = vadd.f32 %v375, %v376
    %v378 = vmul.f32 %v376, %v376
    %v379 = vadd.f32 %v377, %v378
    %v380 = vmul.f32 %v378, %v378
    %v381 = vadd.f32 %v379, %v380
    %v382 = vmul.f32 %v380, %v380
    %v383 = vadd.f32 %v381, %v382
    %v384 = vsub.f32 0.0, %v272
    %v385 = vmul.f32 %v384, %v372
    %v386 = vmul.f32 %v385, 1.442695
    %v387 = vpow.pop %v386
    %v388 = vmul.f32 %v387, %v387
    %v389 = vadd.f32 %v387, %v388
    %v390 = vmul.f32 %v388, %v388
    %v391 = vadd.f32 %v389, %v390
    %v392 = vmul.f32 %v390, %v390
    %v393 = vadd.f32 %v391, %v392
    %v394 = vmul.f32 %v392, %v392
    %v395 = vadd.f32 %v393, %v394
    %v396 = vsub.f32 0.0, %v346
    %v397 = vmul.f32 %v396, %v372
    %v398 = vmul.f32 %v397, 1.442695
    %v399 = vpow.pop %v398
    %v400 = vmul.f32 %v399, %v399
    %v401 = vadd.f32 %v399, %v400
    %v402 = vmul.f32 %v400, %v400
    %v403 = vadd.f32 %v401, %v402
    %v404 = vmul.f32 %v402, %v402
    %v405 = vadd.f32 %v403, %v404
    %v406 = vmul.f32 %v404, %v404
    %v407 = vadd.f32 %v405, %v406
    %v408 = vadd.f32 %v383, %v395
    %v409 = vmul.f32 %v407, 2.0
    %v410 = vsub.f32 %v408, %v409
    %v411 = vsel %vm350, %v410, 0.0
    %412 = vadd.xlane.f32.xlu0 %v411
    %v413 = vpop.xlane.xlu0 %412
    %v414 = vrot.slane %v413, 4
    %v415 = vadd.f32 %v413, %v414
    %v416 = vrot.slane %v415, 2
    %v417 = vadd.f32 %v415, %v416
    %v418 = vrot.slane %v417, 1
    %v419 = vadd.f32 %v417, %v418
    %s420 = vtos %v419
    %v421 = vrcp.pop 64.0
    %s422 = vtos %v421
    %s423 = smul.f32 %s420, %s422
    %v424 = vstv %s423
    %vm425 = vcmask 0
    %426 = vst.msk [vmem:[#allocation7] sm:$0x1] %vm425, %v424
    // Predicated region
    $region18: #{tpu_custom_call.1} parent=1 // pred_check
      _
    $region19: #{tpu_custom_call.1} parent=1 // pred_check_branch
      %428 = sbr.rel (0) target = $region21
    $region20: #{tpu_custom_call.1} parent=1 // pred_region
      %s430 = ssub.s32 16, 16
      %431 = vsyncadd [#allocation4], %s430
      %s433 = sshll.u32 [#allocation7], 4
      %s434 = int_to_ptr.vmem [resolvable:$true] %s433
      %436 = dma.vmem_to_hbm [thread:$0]  %s434, 16, %s2, [#allocation4]
    $region21: #{tpu_custom_call.1} parent=1 // pred_fallthru
      _
    // Predicated region
    $region22: #{tpu_custom_call.1} parent=1 // pred_check
      _
    $region23: #{tpu_custom_call.1} parent=1 // pred_check_branch
      %438 = sbr.rel (0) target = $region25
    $region24: #{tpu_custom_call.1} parent=1 // pred_region
      %439 = dma.done [#allocation4], 16
    $region25: #{tpu_custom_call.1} parent=1 // pred_fallthru
      _
    %440 = vsyncpa [#allocation3], 1
    %441 = vsyncpa [#allocation6], 1
    %442 = vsyncpa [#allocation4], 1

</llo_original>
